<compile_context>
chip_gen: v6e
topology: v6e:2x2x1
jax: 0.10.0
libtpu: 0.0.40
codegen_flags: <defaults>
</compile_context>

<pallas_src>
import jax
import jax.numpy as jnp
from jax.experimental import pallas as pl
from jax.experimental.pallas import tpu as pltpu


def _attn_gate_kernel(g_ref, x_ref, wg_ref, wx_ref, b_ref, wi_ref, bi_ref,
                      out_ref):
    """One (Bt, C, T) channel-major tile of the attention gate.

    g_ref : (Bt, Cg, T)  channel-major tile of g (T spatial columns on lanes)
    x_ref : (Bt, Cx, T)  channel-major tile of x
    wg_ref: (Ci, Cg)     folded conv+BN weight for W_g (activation dtype)
    wx_ref: (Ci, Cx)     folded conv+BN weight for W_x (activation dtype)
    b_ref : (Ci, 1)      folded bias for W_g + folded bias for W_x (f32)
    wi_ref: (Ci, 1)      folded conv+BN weight for psi (f32, reduction weight)
    bi_ref: (1, 1)       folded bias for psi (f32)
    out_ref:(Bt, Cx, T)  x * sigmoid(psi)
    """
    wg = wg_ref[...]          # weights hoisted out of the batch loop
    wx = wx_ref[...]
    bias = b_ref[...]         # (Ci, 1), broadcasts over lanes
    wi = wi_ref[...]          # (Ci, 1)
    bi = bi_ref[...]          # (1, 1)

    bt = g_ref.shape[0]
    for b in range(bt):       # small static unroll over the batch block
        g_t = g_ref[b]        # (Cg, T) native dtype -> straight into the MXU
        x_t = x_ref[b]        # (Cx, T)

        # g1 + x1 (+ pre-summed biases) -> (Ci, T), f32 accumulation on MXU.
        pre = (jnp.dot(wg, g_t, preferred_element_type=jnp.float32)
               + jnp.dot(wx, x_t, preferred_element_type=jnp.float32)
               + bias)
        inter = jnp.maximum(pre, 0.0)                       # (Ci, T) f32

        # psi: 1-row conv as a sublane-weighted reduction (VALU/XLU, not MXU).
        psi = jax.nn.sigmoid(
            jnp.sum(inter * wi, axis=0, keepdims=True) + bi)  # (1, T) f32

        # Gate x in the I/O dtype (bf16 streams keep bf16 vregs/stores).
        out_ref[b] = (x_t * psi.astype(x_t.dtype)).astype(out_ref.dtype)


def _fold_bn(w, b, gamma, beta, mean, var, eps=1e-5):
    """Fold Conv2d(1x1) + BatchNorm2d (eval mode) into (Cout, Cin) weight and
    (Cout,) bias.  w: (Cout, Cin), b: (Cout,)."""
    s = gamma / jnp.sqrt(var + eps)                       # (Cout,)
    w_eff = (w * s[:, None]).astype(jnp.float32)          # (Cout, Cin)
    b_eff = ((b - mean) * s + beta).astype(jnp.float32)   # (Cout,)
    return w_eff, b_eff


def _sublane_pad(c, itemsize):
    """Round a channel count up to the physical sublane tile (8 f32 / 16 bf16)."""
    sub = 8 * max(1, 4 // max(1, itemsize))
    return ((c + sub - 1) // sub) * sub


def _round_up(v, m):
    return ((v + m - 1) // m) * m


def basic_attention_block(g, x, params):
    """g: (N, Cg, H, W), x: (N, Cx, H, W) NCHW.  Returns (N, Cx, H, W) in x.dtype.

    For bandwidth-bound deployments pass g/x as bfloat16: the tiles feed the
    MXU directly in bf16 (f32 accumulation) and the gating/store stay bf16.
    """
    N, Cg, H, W = g.shape
    _, Cx, _, _ = x.shape
    L = H * W

    wg_eff, bg_eff = _fold_bn(params["wg"], params["bg"], params["gamma_g"],
                              params["beta_g"], params["mean_g"], params["var_g"])
    wx_eff, bx_eff = _fold_bn(params["wx"], params["bx"], params["gamma_x"],
                              params["beta_x"], params["mean_x"], params["var_x"])
    wi_eff, bi_eff = _fold_bn(params["wi"], params["bi"], params["gamma_i"],
                              params["beta_i"], params["mean_i"], params["var_i"])
    Ci = wg_eff.shape[0]

    # Matmul weights in the activation dtype (MXU eats bf16 natively); biases
    # and the psi reduction weight stay f32.
    wg_k = wg_eff.astype(g.dtype)
    wx_k = wx_eff.astype(x.dtype)
    b_sum = (bg_eff + bx_eff).reshape(Ci, 1)              # f32
    wi_col = wi_eff.reshape(Ci, 1).astype(jnp.float32)
    bi2 = bi_eff.reshape(1, 1)

    # Free reshape: NCHW is contiguous in (N, C, H*W).
    g3 = g.reshape(N, Cg, L)
    x3 = x.reshape(N, Cx, L)

    # ---- generation-aware VMEM budget -----------------------------------
    try:
        vmem_cap = int(pltpu.get_tpu_info().vmem_capacity_bytes)
    except Exception:
        vmem_cap = 64 * 1024 * 1024          # conservative fallback (v7x per-TC)
    budget = int(vmem_cap * 0.55)
    vmem_limit = int(min(int(vmem_cap * 0.75), budget + (8 << 20)))
    tile_budget = max(budget - (4 << 20), 4 << 20)  # headroom: weights + scratch

    in_b = jnp.dtype(g.dtype).itemsize
    out_b = jnp.dtype(x.dtype).itemsize
    cg_p = _sublane_pad(Cg, in_b)
    cx_pi = _sublane_pad(Cx, in_b)
    cx_po = _sublane_pad(Cx, out_b)
    ci_p = _sublane_pad(Ci, 4)
    # Bytes per spatial column per batch element per step (sublane-padded,
    # double-buffered I/O, f32 intermediates, no f32 upcast copies of g/x).
    per_col = (2 * (cg_p + cx_pi) * in_b     # g, x tiles (double buffered)
               + 2 * cx_po * out_b           # output tile (double buffered)
               + 2 * ci_p * 4                # pre + relu intermediates (f32)
               + 8 * 4                       # psi row (padded to 8 sublanes)
               + cx_po * out_b)              # gating temp

    # ---- spatial tile: biggest lane-aligned T that fits the budget -------
    t_max = max(128, (tile_budget // per_col) // 128 * 128)
    if L <= 128:
        T = L                                 # full-extent last dim: layout-legal
    elif L % 128 == 0:
        T = min(L, t_max)
    else:
        T = min((L // 128) * 128, t_max)      # lane-aligned; last block masked
    num_tiles = pl.cdiv(L, T)

    # ---- batch blocking: amortize per-step overhead, bigger DMAs ---------
    step_bytes_per_elem = per_col * T
    target_step_bytes = 4 << 20
    bt_target = max(1, pl.cdiv(target_step_bytes, step_bytes_per_elem))
    bt_vmem = max(1, tile_budget // step_bytes_per_elem)
    Bt = int(max(1, min(N, bt_target, bt_vmem)))

    # v7x megacore: ensure >= 2 parallel grid steps whenever possible.
    if pl.cdiv(N, Bt) * num_tiles < 2:
        if num_tiles == 1 and T > 128:
            T = max(128, _round_up(pl.cdiv(L, 2), 128))
            num_tiles = pl.cdiv(L, T)
        elif Bt > 1:
            Bt = max(1, Bt // 2)

    grid = (pl.cdiv(N, Bt), num_tiles)

    row_g = pl.BlockSpec((Bt, Cg, T), lambda n, j: (n, 0, j))
    row_x = pl.BlockSpec((Bt, Cx, T), lambda n, j: (n, 0, j))
    row_o = pl.BlockSpec((Bt, Cx, T), lambda n, j: (n, 0, j))
    full = lambda shape: pl.BlockSpec(shape, lambda n, j: (0, 0))

    out3 = pl.pallas_call(
        _attn_gate_kernel,
        out_shape=jax.ShapeDtypeStruct((N, Cx, L), x.dtype),
        grid_spec=pltpu.PrefetchScalarGridSpec(
            num_scalar_prefetch=0,
            grid=grid,
            in_specs=[
                row_g,                 # g tile   (Bt, Cg, T)
                row_x,                 # x tile   (Bt, Cx, T)
                full((Ci, Cg)),        # wg (activation dtype)
                full((Ci, Cx)),        # wx (activation dtype)
                full((Ci, 1)),         # bg + bx  (f32)
                full((Ci, 1)),         # wi as reduction column (f32)
                full((1, 1)),          # bi (f32)
            ],
            out_specs=row_o,
        ),
        compiler_params=pltpu.CompilerParams(
            dimension_semantics=("parallel", "parallel"),
            vmem_limit_bytes=vmem_limit),
    )(g3, x3, wg_k, wx_k, b_sum, wi_col, bi2)

    return out3.reshape(N, Cx, H, W)


def _reference(g, x, params):
    """Pure-JAX reference of the same (eval-mode BN) forward."""
    wg_eff, bg_eff = _fold_bn(params["wg"], params["bg"], params["gamma_g"],
                              params["beta_g"], params["mean_g"], params["var_g"])
    wx_eff, bx_eff = _fold_bn(params["wx"], params["bx"], params["gamma_x"],
                              params["beta_x"], params["mean_x"], params["var_x"])
    wi_eff, bi_eff = _fold_bn(params["wi"], params["bi"], params["gamma_i"],
                              params["beta_i"], params["mean_i"], params["var_i"])
    g1 = jnp.einsum("nchw,dc->ndhw", g, wg_eff) + bg_eff[None, :, None, None]
    x1 = jnp.einsum("nchw,dc->ndhw", x, wx_eff) + bx_eff[None, :, None, None]
    inter = jnp.maximum(g1 + x1, 0.0)
    psi = jax.nn.sigmoid(
        jnp.einsum("nchw,dc->ndhw", inter, wi_eff) + bi_eff[None, :, None, None])
    return x * psi


if __name__ == "__main__":
    key = jax.random.PRNGKey(0)
    ks = jax.random.split(key, 16)

    # Shapes: batch=2, C_g=4, C_x=4, C_inter=8, spatial 16x16
    N, Cg, Cx, Ci, H, W = 2, 4, 4, 8, 16, 16

    g = jax.random.normal(ks[0], (N, Cg, H, W), jnp.float32)
    x = jax.random.normal(ks[1], (N, Cx, H, W), jnp.float32)

    params = dict(
        # W_g conv (Cout=Ci, Cin=Cg) + BN(Ci)
        wg=jax.random.normal(ks[2], (Ci, Cg), jnp.float32) * 0.2,
        bg=jax.random.normal(ks[3], (Ci,), jnp.float32) * 0.1,
        gamma_g=1.0 + 0.1 * jax.random.normal(ks[4], (Ci,), jnp.float32),
        beta_g=0.1 * jax.random.normal(ks[5], (Ci,), jnp.float32),
        mean_g=0.05 * jax.random.normal(ks[6], (Ci,), jnp.float32),
        var_g=jnp.abs(1.0 + 0.1 * jax.random.normal(ks[7], (Ci,), jnp.float32)),
        # W_x conv (Cout=Ci, Cin=Cx) + BN(Ci)
        wx=jax.random.normal(ks[8], (Ci, Cx), jnp.float32) * 0.2,
        bx=jax.random.normal(ks[9], (Ci,), jnp.float32) * 0.1,
        gamma_x=1.0 + 0.1 * jax.random.normal(ks[10], (Ci,), jnp.float32),
        beta_x=0.1 * jax.random.normal(ks[11], (Ci,), jnp.float32),
        mean_x=0.05 * jax.random.normal(ks[12], (Ci,), jnp.float32),
        var_x=jnp.abs(1.0 + 0.1 * jax.random.normal(ks[13], (Ci,), jnp.float32)),
        # inter conv (Cout=1, Cin=Ci) + BN(1)
        wi=jax.random.normal(ks[14], (1, Ci), jnp.float32) * 0.2,
        bi=0.1 * jax.random.normal(ks[15], (1,), jnp.float32),
        gamma_i=jnp.ones((1,), jnp.float32),
        beta_i=jnp.zeros((1,), jnp.float32),
        mean_i=jnp.zeros((1,), jnp.float32),
        var_i=jnp.ones((1,), jnp.float32),
    )
    # TODO(synk): BatchNorm is implemented in inference mode (running stats
    # folded into the 1x1 convs); training-mode batch statistics are not computed.

    out = basic_attention_block(g, x, params)
    out = jax.block_until_ready(out)

    ref = _reference(g, x, params)
    assert out.shape == (N, Cx, H, W)
    assert jnp.allclose(out, ref, atol=2e-5, rtol=1e-5)

    print("KERNEL_OK")
</pallas_src>

<mosaic_0001>
module attributes {stable_mosaic.version = 11 : i64} {
  func.func @_attn_gate_kernel(%arg0: i32, %arg1: i32, %arg2: memref<2x4x128xf32, #tpu.memory_space<vmem>>, %arg3: memref<2x4x128xf32, #tpu.memory_space<vmem>>, %arg4: memref<8x4xf32, #tpu.memory_space<vmem>>, %arg5: memref<8x4xf32, #tpu.memory_space<vmem>>, %arg6: memref<8x1xf32, #tpu.memory_space<vmem>>, %arg7: memref<8x1xf32, #tpu.memory_space<vmem>>, %arg8: memref<1x1xf32, #tpu.memory_space<vmem>>, %arg9: memref<2x4x128xf32, #tpu.memory_space<vmem>>) attributes {dimension_semantics = [#tpu.dimension_semantics<parallel>, #tpu.dimension_semantics<parallel>], iteration_bounds = array<i64: 1, 2>, scalar_prefetch = 0 : i64, scratch_operands = 0 : i64, tpu.core_type = #tpu.core_type<tc>, window_params = [{transform_indices = @transform_0, window_bounds = array<i64: 2, 4, 128>}, {transform_indices = @transform_1, window_bounds = array<i64: 2, 4, 128>}, {pipeline_mode = #tpu.pipeline_mode<synchronous>, transform_indices = @transform_2, window_bounds = array<i64: 8, 4>}, {pipeline_mode = #tpu.pipeline_mode<synchronous>, transform_indices = @transform_3, window_bounds = array<i64: 8, 4>}, {pipeline_mode = #tpu.pipeline_mode<synchronous>, transform_indices = @transform_4, window_bounds = array<i64: 8, 1>}, {pipeline_mode = #tpu.pipeline_mode<synchronous>, transform_indices = @transform_5, window_bounds = array<i64: 8, 1>}, {pipeline_mode = #tpu.pipeline_mode<synchronous>, transform_indices = @transform_6, window_bounds = array<i64: 1, 1>}, {transform_indices = @transform_7, window_bounds = array<i64: 2, 4, 128>}]} {
    %c0 = arith.constant 0 : index
    %c0_0 = arith.constant 0 : index
    %0 = vector.load %arg4[%c0, %c0_0] : memref<8x4xf32, #tpu.memory_space<vmem>>, vector<8x4xf32>
    %c0_1 = arith.constant 0 : index
    %c0_2 = arith.constant 0 : index
    %1 = vector.load %arg5[%c0_1, %c0_2] : memref<8x4xf32, #tpu.memory_space<vmem>>, vector<8x4xf32>
    %c0_3 = arith.constant 0 : index
    %c0_4 = arith.constant 0 : index
    %2 = vector.load %arg6[%c0_3, %c0_4] : memref<8x1xf32, #tpu.memory_space<vmem>>, vector<8x1xf32>
    %c0_5 = arith.constant 0 : index
    %c0_6 = arith.constant 0 : index
    %3 = vector.load %arg7[%c0_5, %c0_6] : memref<8x1xf32, #tpu.memory_space<vmem>>, vector<8x1xf32>
    %c0_7 = arith.constant 0 : index
    %c0_8 = arith.constant 0 : index
    %4 = vector.load %arg8[%c0_7, %c0_8] : memref<1x1xf32, #tpu.memory_space<vmem>>, vector<1x1xf32>
    %c0_9 = arith.constant 0 : index
    %c0_10 = arith.constant 0 : index
    %c0_11 = arith.constant 0 : index
    %5 = vector.load %arg2[%c0_9, %c0_10, %c0_11] : memref<2x4x128xf32, #tpu.memory_space<vmem>>, vector<1x4x128xf32>
    %6 = vector.shape_cast %5 : vector<1x4x128xf32> to vector<4x128xf32>
    %c0_12 = arith.constant 0 : index
    %c0_13 = arith.constant 0 : index
    %c0_14 = arith.constant 0 : index
    %7 = vector.load %arg3[%c0_12, %c0_13, %c0_14] : memref<2x4x128xf32, #tpu.memory_space<vmem>>, vector<1x4x128xf32>
    %8 = vector.shape_cast %7 : vector<1x4x128xf32> to vector<4x128xf32>
    %cst = arith.constant dense<0.000000e+00> : vector<8x128xf32>
    %9 = tpu.matmul %0, %6, %cst {dimension_numbers = #tpu.dot_dimension_numbers<[1], [0], [0], [1], [0, 0, 1, 1], [], []>} : vector<8x4xf32>, vector<4x128xf32>, vector<8x128xf32> -> vector<8x128xf32>
    %cst_15 = arith.constant dense<0.000000e+00> : vector<8x128xf32>
    %10 = tpu.matmul %1, %8, %cst_15 {dimension_numbers = #tpu.dot_dimension_numbers<[1], [0], [0], [1], [0, 0, 1, 1], [], []>} : vector<8x4xf32>, vector<4x128xf32>, vector<8x128xf32> -> vector<8x128xf32>
    %11 = arith.addf %9, %10 : vector<8x128xf32>
    %12 = vector.broadcast %2 : vector<8x1xf32> to vector<8x128xf32>
    %13 = arith.addf %11, %12 : vector<8x128xf32>
    %cst_16 = arith.constant 0.000000e+00 : f32
    %14 = vector.broadcast %cst_16 : f32 to vector<8x128xf32>
    %15 = arith.maximumf %13, %14 : vector<8x128xf32>
    %16 = vector.broadcast %3 : vector<8x1xf32> to vector<8x128xf32>
    %17 = arith.mulf %15, %16 : vector<8x128xf32>
    %cst_17 = arith.constant dense<0.000000e+00> : vector<128xf32>
    %18 = vector.multi_reduction <add>, %17, %cst_17 [0] : vector<8x128xf32> to vector<128xf32>
    %19 = vector.shape_cast %18 : vector<128xf32> to vector<1x128xf32>
    %20 = vector.broadcast %4 : vector<1x1xf32> to vector<1x128xf32>
    %21 = arith.addf %19, %20 : vector<1x128xf32>
    %22 = arith.negf %21 : vector<1x128xf32>
    %23 = math.exp %22 : vector<1x128xf32>
    %cst_18 = arith.constant 1.000000e+00 : f32
    %24 = vector.broadcast %cst_18 : f32 to vector<1x128xf32>
    %25 = arith.addf %24, %23 : vector<1x128xf32>
    %26 = arith.divf %24, %25 : vector<1x128xf32>
    %27 = vector.broadcast %26 : vector<1x128xf32> to vector<4x128xf32>
    %28 = arith.mulf %8, %27 : vector<4x128xf32>
    %c0_19 = arith.constant 0 : index
    %c0_20 = arith.constant 0 : index
    %c0_21 = arith.constant 0 : index
    %29 = vector.load %arg9[%c0_19, %c0_20, %c0_21] : memref<2x4x128xf32, #tpu.memory_space<vmem>>, vector<1x4x128xf32>
    %30 = vector.shape_cast %29 : vector<1x4x128xf32> to vector<4x128xf32>
    %31 = vector.shape_cast %28 : vector<4x128xf32> to vector<1x4x128xf32>
    tpu.vector_store %arg9[%c0_19, %c0_20, %c0_21], %31 {strides = array<i32>} : memref<2x4x128xf32, #tpu.memory_space<vmem>>, vector<1x4x128xf32>,
    %c1 = arith.constant 1 : index
    %c0_22 = arith.constant 0 : index
    %c0_23 = arith.constant 0 : index
    %32 = vector.load %arg2[%c1, %c0_22, %c0_23] : memref<2x4x128xf32, #tpu.memory_space<vmem>>, vector<1x4x128xf32>
    %33 = vector.shape_cast %32 : vector<1x4x128xf32> to vector<4x128xf32>
    %c1_24 = arith.constant 1 : index
    %c0_25 = arith.constant 0 : index
    %c0_26 = arith.constant 0 : index
    %34 = vector.load %arg3[%c1_24, %c0_25, %c0_26] : memref<2x4x128xf32, #tpu.memory_space<vmem>>, vector<1x4x128xf32>
    %35 = vector.shape_cast %34 : vector<1x4x128xf32> to vector<4x128xf32>
    %cst_27 = arith.constant dense<0.000000e+00> : vector<8x128xf32>
    %36 = tpu.matmul %0, %33, %cst_27 {dimension_numbers = #tpu.dot_dimension_numbers<[1], [0], [0], [1], [0, 0, 1, 1], [], []>} : vector<8x4xf32>, vector<4x128xf32>, vector<8x128xf32> -> vector<8x128xf32>
    %cst_28 = arith.constant dense<0.000000e+00> : vector<8x128xf32>
    %37 = tpu.matmul %1, %35, %cst_28 {dimension_numbers = #tpu.dot_dimension_numbers<[1], [0], [0], [1], [0, 0, 1, 1], [], []>} : vector<8x4xf32>, vector<4x128xf32>, vector<8x128xf32> -> vector<8x128xf32>
    %38 = arith.addf %36, %37 : vector<8x128xf32>
    %39 = vector.broadcast %2 : vector<8x1xf32> to vector<8x128xf32>
    %40 = arith.addf %38, %39 : vector<8x128xf32>
    %cst_29 = arith.constant 0.000000e+00 : f32
    %41 = vector.broadcast %cst_29 : f32 to vector<8x128xf32>
    %42 = arith.maximumf %40, %41 : vector<8x128xf32>
    %43 = vector.broadcast %3 : vector<8x1xf32> to vector<8x128xf32>
    %44 = arith.mulf %42, %43 : vector<8x128xf32>
    %cst_30 = arith.constant dense<0.000000e+00> : vector<128xf32>
    %45 = vector.multi_reduction <add>, %44, %cst_30 [0] : vector<8x128xf32> to vector<128xf32>
    %46 = vector.shape_cast %45 : vector<128xf32> to vector<1x128xf32>
    %47 = vector.broadcast %4 : vector<1x1xf32> to vector<1x128xf32>
    %48 = arith.addf %46, %47 : vector<1x128xf32>
    %49 = arith.negf %48 : vector<1x128xf32>
    %50 = math.exp %49 : vector<1x128xf32>
    %cst_31 = arith.constant 1.000000e+00 : f32
    %51 = vector.broadcast %cst_31 : f32 to vector<1x128xf32>
    %52 = arith.addf %51, %50 : vector<1x128xf32>
    %53 = arith.divf %51, %52 : vector<1x128xf32>
    %54 = vector.broadcast %53 : vector<1x128xf32> to vector<4x128xf32>
    %55 = arith.mulf %35, %54 : vector<4x128xf32>
    %c1_32 = arith.constant 1 : index
    %c0_33 = arith.constant 0 : index
    %c0_34 = arith.constant 0 : index
    %56 = vector.load %arg9[%c1_32, %c0_33, %c0_34] : memref<2x4x128xf32, #tpu.memory_space<vmem>>, vector<1x4x128xf32>
    %57 = vector.shape_cast %56 : vector<1x4x128xf32> to vector<4x128xf32>
    %58 = vector.shape_cast %55 : vector<4x128xf32> to vector<1x4x128xf32>
    tpu.vector_store %arg9[%c1_32, %c0_33, %c0_34], %58 {strides = array<i32>} : memref<2x4x128xf32, #tpu.memory_space<vmem>>, vector<1x4x128xf32>,
    return
  }
  func.func @transform_0(%arg0: i32, %arg1: i32) -> (i32, i32, i32) {
    %c0_i32 = arith.constant 0 : i32
    %c0_i32_0 = arith.constant 0 : i32
    return %arg0, %c0_i32, %arg1 : i32, i32, i32
  }
  func.func @transform_1(%arg0: i32, %arg1: i32) -> (i32, i32, i32) {
    %c0_i32 = arith.constant 0 : i32
    %c0_i32_0 = arith.constant 0 : i32
    return %arg0, %c0_i32, %arg1 : i32, i32, i32
  }
  func.func @transform_2(%arg0: i32, %arg1: i32) -> (i32, i32) {
    %c0_i32 = arith.constant 0 : i32
    %c0_i32_0 = arith.constant 0 : i32
    %c0_i32_1 = arith.constant 0 : i32
    return %c0_i32, %c0_i32_0 : i32, i32
  }
  func.func @transform_3(%arg0: i32, %arg1: i32) -> (i32, i32) {
    %c0_i32 = arith.constant 0 : i32
    %c0_i32_0 = arith.constant 0 : i32
    %c0_i32_1 = arith.constant 0 : i32
    return %c0_i32, %c0_i32_0 : i32, i32
  }
  func.func @transform_4(%arg0: i32, %arg1: i32) -> (i32, i32) {
    %c0_i32 = arith.constant 0 : i32
    %c0_i32_0 = arith.constant 0 : i32
    %c0_i32_1 = arith.constant 0 : i32
    return %c0_i32, %c0_i32_0 : i32, i32
  }
  func.func @transform_5(%arg0: i32, %arg1: i32) -> (i32, i32) {
    %c0_i32 = arith.constant 0 : i32
    %c0_i32_0 = arith.constant 0 : i32
    %c0_i32_1 = arith.constant 0 : i32
    return %c0_i32, %c0_i32_0 : i32, i32
  }
  func.func @transform_6(%arg0: i32, %arg1: i32) -> (i32, i32) {
    %c0_i32 = arith.constant 0 : i32
    %c0_i32_0 = arith.constant 0 : i32
    %c0_i32_1 = arith.constant 0 : i32
    return %c0_i32, %c0_i32_0 : i32, i32
  }
  func.func @transform_7(%arg0: i32, %arg1: i32) -> (i32, i32, i32) {
    %c0_i32 = arith.constant 0 : i32
    %c0_i32_0 = arith.constant 0 : i32
    return %arg0, %c0_i32, %arg1 : i32, i32, i32
  }
}

</mosaic_0001>

<llo_original>
// kernel: tpu_custom_call.1
$region0: #{tpu_custom_call.1}
  #allocation0 [shape = 'u32[]', space=smem, size = 0x4, offset = 0x4, fixed_abs, tag = 'smem constant byte address 0x4 - core index']
  #allocation1 [shape = 'u32[144,128]{1,0:T(1,128)}', space=vmem, size = 0x12000, scoped, tag = 'internal scratch']
  #allocation2 [shape = 'f32[1,1]{1,0:T(1,128)S(1)}', space=vmem, size = 0x200, scoped, tag = 'scoped memory for tpu_custom_call.1']
  %s0 = inlined_call_operand.vmem [shape: f32[2,4,256], index: 0, kind: input, shape index: {}]
  %s1 = inlined_call_operand.vmem [shape: f32[2,4,256], index: 1, kind: input, shape index: {}]
  %s2 = inlined_call_operand.vmem [shape: f32[8,4], index: 2, kind: input, shape index: {}]
  %s3 = inlined_call_operand.vmem [shape: f32[8,4], index: 3, kind: input, shape index: {}]
  %s4 = inlined_call_operand.vmem [shape: f32[8,1], index: 4, kind: input, shape index: {}]
  %s5 = inlined_call_operand.vmem [shape: f32[8,1], index: 5, kind: input, shape index: {}]
  %s6 = inlined_call_operand.<no memory space> [shape: f32[1,1], index: 6, kind: input, shape index: {}]
  %s7 = inlined_call_operand.hbm [shape: f32[2,4,256], index: 7, kind: output, shape index: {}]
  %s8 = sld [smem:[#allocation0]]
  $region143: #{tpu_custom_call.1} parent=0
    _
  %s10 = ssub.s32 1, %s8
  %s11 = scalar_select 0, %s10, %s8
  %v12 = vstv %s6
  %13 = vst [vmem:[#allocation2] sm:$0x1] %v12
  $region1: #{tpu_custom_call.1} parent=0
    #allocation3 [shape = 'u8[8192]{0}', space=vmem, size = 0x2000, scoped, tag = 'input window, operand 0']
    #allocation4 [shape = 'u8[8192]{0}', space=vmem, size = 0x2000, scoped, tag = 'input window, operand 1']
    #allocation5 [shape = 'u8[8192]{0}', space=vmem, size = 0x2000, scoped, tag = 'output window, operand 0']
    #allocation6 [shape = 's32[2]{0}', space=sflag, size = 0x8, scoped, tag = 'scoped memory for tpu_custom_call.1']
    %14 = vsyncpa [#allocation6], 0
    %s15 = scalar_lea.sflag [#allocation6], 1
    %16 = vsyncpa %s15, 0
    loop: start=0, step=1, limit=4
    $region2: #{tpu_custom_call.1} parent=1 // loop_pre_header
      _
    $region3: #{tpu_custom_call.1} parent=1 // loop_header
      %s18 = sphi 0, %s22
      %p19 = scmp.ge.s32.totalorder %s18, 4
      %s25 = sphi 0, %s37
      %s26 = sphi 0, %s33
      %s27 = sphi 0, %s25
      %s28 = sphi 0, %s26
      %s29 = sphi 0, %s27
      %s30 = sphi 0, %s28
      %s42 = sphi 0, %s44
      %s45 = sphi 0, %s42
      %s46 = sphi 0, %s45
      %s62 = sphi 0, %s46
      %s70 = sphi 0, %s72
      %s73 = sphi 0, %s70
      %s74 = sphi 0, %s73
      %s90 = sphi 0, %s74
      %s94 = sphi 0, %s94
      %s96 = sphi 0, %s94
      %s97 = sphi 0, %s96
      %s111 = sphi 0, %s97
      %s115 = sphi 0, %s115
      %s117 = sphi 0, %s115
      %s118 = sphi 0, %s117
      %s132 = sphi 0, %s118
      %s136 = sphi 0, %s136
      %s138 = sphi 0, %s136
      %s139 = sphi 0, %s138
      %s153 = sphi 0, %s139
      %s157 = sphi 0, %s157
      %s159 = sphi 0, %s157
      %s160 = sphi 0, %s159
      %s174 = sphi 0, %s160
      %s178 = sphi 0, %s178
      %s180 = sphi 0, %s178
      %s181 = sphi 0, %s180
      %s195 = sphi 0, %s181
      %s203 = sphi 0, %s205
      %s206 = sphi 0, %s203
      %s207 = sphi 0, %s206
      %s223 = sphi 0, %s207
    $region4: #{tpu_custom_call.1} parent=1 // loop_header_branch
      %21 = sbr.rel (%p19) target = $region8
    $region5: #{tpu_custom_call.1} parent=1 // loop_body
      %s23 = ssub.s32 %s18, 1
      %s24 = ssub.s32 %s18, 2
      %s31 = sadd.s32 1, %s26
      %p32 = scmp.ge.s32.totalorder %s31, 2
      %s33 = scalar_select %p32, 0, %s31
      %s34 = sadd.s32 1, %s25
      %s35 = scalar_select %p32, %s34, %s25
      %p36 = scmp.ge.s32.totalorder %s35, 1
      %s37 = scalar_select %p36, 0, %s35
      %s38 = ssub.s32 %s25, %s37
      %s39 = ssub.s32 %s26, %s33
      %s40 = sor.u32 %s38, %s39
      %p41 = scmp.eq.s32.totalorder %s40, 0
      %s43 = sadd.s32 %s42, 1
      %s44 = scalar_select %p41, %s42, %s43
      %p47 = pneg %p41
      %p48 = scmp.eq.s32.totalorder %s18, 1
      %p49 = por %p47, %p48
      %p50 = scmp.ne.s32.totalorder %s42, %s45
      %p51 = scmp.eq.s32.totalorder %s18, 0
      %p52 = por %p50, %p51
      %p53 = scmp.ne.s32.totalorder %s42, %s45
      %p54 = scmp.eq.s32.totalorder %s23, 1
      %p55 = por %p53, %p54
      %p56 = scmp.ne.s32.totalorder %s45, %s46
      %p57 = scmp.eq.s32.totalorder %s23, 0
      %p58 = por %p56, %p57
      %p59 = scmp.ne.s32.totalorder %s45, %s46
      %p60 = scmp.eq.s32.totalorder %s24, 1
      %p61 = por %p59, %p60
      %p63 = scmp.ne.s32.totalorder %s46, %s62
      %p64 = scmp.eq.s32.totalorder %s24, 0
      %p65 = por %p63, %p64
      %s66 = ssub.s32 %s25, %s37
      %s67 = ssub.s32 %s26, %s33
      %s68 = sor.u32 %s66, %s67
      %p69 = scmp.eq.s32.totalorder %s68, 0
      %s71 = sadd.s32 %s70, 1
      %s72 = scalar_select %p69, %s70, %s71
      %p75 = pneg %p69
      %p76 = scmp.eq.s32.totalorder %s18, 1
      %p77 = por %p75, %p76
      %p78 = scmp.ne.s32.totalorder %s70, %s73
      %p79 = scmp.eq.s32.totalorder %s18, 0
      %p80 = por %p78, %p79
      %p81 = scmp.ne.s32.totalorder %s70, %s73
      %p82 = scmp.eq.s32.totalorder %s23, 1
      %p83 = por %p81, %p82
      %p84 = scmp.ne.s32.totalorder %s73, %s74
      %p85 = scmp.eq.s32.totalorder %s23, 0
      %p86 = por %p84, %p85
      %p87 = scmp.ne.s32.totalorder %s73, %s74
      %p88 = scmp.eq.s32.totalorder %s24, 1
      %p89 = por %p87, %p88
      %p91 = scmp.ne.s32.totalorder %s74, %s90
      %p92 = scmp.eq.s32.totalorder %s24, 0
      %p93 = por %p91, %p92
      %s95 = sadd.s32 %s94, 1
      %p98 = scmp.eq.s32.totalorder %s18, 1
      %p99 = scmp.ne.s32.totalorder %s94, %s96
      %p100 = scmp.eq.s32.totalorder %s18, 0
      %p101 = por %p99, %p100
      %p102 = scmp.ne.s32.totalorder %s94, %s96
      %p103 = scmp.eq.s32.totalorder %s23, 1
      %p104 = por %p102, %p103
      %p105 = scmp.ne.s32.totalorder %s96, %s97
      %p106 = scmp.eq.s32.totalorder %s23, 0
      %p107 = por %p105, %p106
      %p108 = scmp.ne.s32.totalorder %s96, %s97
      %p109 = scmp.eq.s32.totalorder %s24, 1
      %p110 = por %p108, %p109
      %p112 = scmp.ne.s32.totalorder %s97, %s111
      %p113 = scmp.eq.s32.totalorder %s24, 0
      %p114 = por %p112, %p113
      %s116 = sadd.s32 %s115, 1
      %p119 = scmp.eq.s32.totalorder %s18, 1
      %p120 = scmp.ne.s32.totalorder %s115, %s117
      %p121 = scmp.eq.s32.totalorder %s18, 0
      %p122 = por %p120, %p121
      %p123 = scmp.ne.s32.totalorder %s115, %s117
      %p124 = scmp.eq.s32.totalorder %s23, 1
      %p125 = por %p123, %p124
      %p126 = scmp.ne.s32.totalorder %s117, %s118
      %p127 = scmp.eq.s32.totalorder %s23, 0
      %p128 = por %p126, %p127
      %p129 = scmp.ne.s32.totalorder %s117, %s118
      %p130 = scmp.eq.s32.totalorder %s24, 1
      %p131 = por %p129, %p130
      %p133 = scmp.ne.s32.totalorder %s118, %s132
      %p134 = scmp.eq.s32.totalorder %s24, 0
      %p135 = por %p133, %p134
      %s137 = sadd.s32 %s136, 1
      %p140 = scmp.eq.s32.totalorder %s18, 1
      %p141 = scmp.ne.s32.totalorder %s136, %s138
      %p142 = scmp.eq.s32.totalorder %s18, 0
      %p143 = por %p141, %p142
      %p144 = scmp.ne.s32.totalorder %s136, %s138
      %p145 = scmp.eq.s32.totalorder %s23, 1
      %p146 = por %p144, %p145
      %p147 = scmp.ne.s32.totalorder %s138, %s139
      %p148 = scmp.eq.s32.totalorder %s23, 0
      %p149 = por %p147, %p148
      %p150 = scmp.ne.s32.totalorder %s138, %s139
      %p151 = scmp.eq.s32.totalorder %s24, 1
      %p152 = por %p150, %p151
      %p154 = scmp.ne.s32.totalorder %s139, %s153
      %p155 = scmp.eq.s32.totalorder %s24, 0
      %p156 = por %p154, %p155
      %s158 = sadd.s32 %s157, 1
      %p161 = scmp.eq.s32.totalorder %s18, 1
      %p162 = scmp.ne.s32.totalorder %s157, %s159
      %p163 = scmp.eq.s32.totalorder %s18, 0
      %p164 = por %p162, %p163
      %p165 = scmp.ne.s32.totalorder %s157, %s159
      %p166 = scmp.eq.s32.totalorder %s23, 1
      %p167 = por %p165, %p166
      %p168 = scmp.ne.s32.totalorder %s159, %s160
      %p169 = scmp.eq.s32.totalorder %s23, 0
      %p170 = por %p168, %p169
      %p171 = scmp.ne.s32.totalorder %s159, %s160
      %p172 = scmp.eq.s32.totalorder %s24, 1
      %p173 = por %p171, %p172
      %p175 = scmp.ne.s32.totalorder %s160, %s174
      %p176 = scmp.eq.s32.totalorder %s24, 0
      %p177 = por %p175, %p176
      %s179 = sadd.s32 %s178, 1
      %p182 = scmp.eq.s32.totalorder %s18, 1
      %p183 = scmp.ne.s32.totalorder %s178, %s180
      %p184 = scmp.eq.s32.totalorder %s18, 0
      %p185 = por %p183, %p184
      %p186 = scmp.ne.s32.totalorder %s178, %s180
      %p187 = scmp.eq.s32.totalorder %s23, 1
      %p188 = por %p186, %p187
      %p189 = scmp.ne.s32.totalorder %s180, %s181
      %p190 = scmp.eq.s32.totalorder %s23, 0
      %p191 = por %p189, %p190
      %p192 = scmp.ne.s32.totalorder %s180, %s181
      %p193 = scmp.eq.s32.totalorder %s24, 1
      %p194 = por %p192, %p193
      %p196 = scmp.ne.s32.totalorder %s181, %s195
      %p197 = scmp.eq.s32.totalorder %s24, 0
      %p198 = por %p196, %p197
      %s199 = ssub.s32 %s25, %s37
      %s200 = ssub.s32 %s26, %s33
      %s201 = sor.u32 %s199, %s200
      %p202 = scmp.eq.s32.totalorder %s201, 0
      %s204 = sadd.s32 %s203, 1
      %s205 = scalar_select %p202, %s203, %s204
      %p208 = pneg %p202
      %p209 = scmp.eq.s32.totalorder %s18, 1
      %p210 = por %p208, %p209
      %p211 = scmp.ne.s32.totalorder %s203, %s206
      %p212 = scmp.eq.s32.totalorder %s18, 0
      %p213 = por %p211, %p212
      %p214 = scmp.ne.s32.totalorder %s203, %s206
      %p215 = scmp.eq.s32.totalorder %s23, 1
      %p216 = por %p214, %p215
      %p217 = scmp.ne.s32.totalorder %s206, %s207
      %p218 = scmp.eq.s32.totalorder %s23, 0
      %p219 = por %p217, %p218
      %p220 = scmp.ne.s32.totalorder %s206, %s207
      %p221 = scmp.eq.s32.totalorder %s24, 1
      %p222 = por %p220, %p221
      %p224 = scmp.ne.s32.totalorder %s207, %s223
      %p225 = scmp.eq.s32.totalorder %s24, 0
      %p226 = por %p224, %p225
      %p227 = scmp.le.s32.totalorder 1, %s18
      %p228 = scmp.lt.s32.totalorder %s18, 3
      %p229 = pnand %p227, %p228
      %p230 = pneg %p229
      // Predicated region
      $region9: #{tpu_custom_call.1} parent=5 // pred_check
        _
      $region10: #{tpu_custom_call.1} parent=5 // pred_check_branch
        %232 = sbr.rel (%p229) target = $region12
      $region11: #{tpu_custom_call.1} parent=5 // pred_region
        %s233 = ssub.s32 %s18, 1
        // Predicated region
        $region13: #{tpu_custom_call.1} parent=11 // pred_check
          %p234 = pneg %p107
        $region14: #{tpu_custom_call.1} parent=11 // pred_check_branch
          %236 = sbr.rel (%p234) target = $region16
        $region15: #{tpu_custom_call.1} parent=11 // pred_region
          _
        $region16: #{tpu_custom_call.1} parent=11 // pred_fallthru
          _
        // Predicated region
        $region17: #{tpu_custom_call.1} parent=11 // pred_check
          %p237 = pneg %p128
        $region18: #{tpu_custom_call.1} parent=11 // pred_check_branch
          %239 = sbr.rel (%p237) target = $region20
        $region19: #{tpu_custom_call.1} parent=11 // pred_region
          _
        $region20: #{tpu_custom_call.1} parent=11 // pred_fallthru
          _
        // Predicated region
        $region21: #{tpu_custom_call.1} parent=11 // pred_check
          %p240 = pneg %p149
        $region22: #{tpu_custom_call.1} parent=11 // pred_check_branch
          %242 = sbr.rel (%p240) target = $region24
        $region23: #{tpu_custom_call.1} parent=11 // pred_region
          _
        $region24: #{tpu_custom_call.1} parent=11 // pred_fallthru
          _
        // Predicated region
        $region25: #{tpu_custom_call.1} parent=11 // pred_check
          %p243 = pneg %p170
        $region26: #{tpu_custom_call.1} parent=11 // pred_check_branch
          %245 = sbr.rel (%p243) target = $region28
        $region27: #{tpu_custom_call.1} parent=11 // pred_region
          _
        $region28: #{tpu_custom_call.1} parent=11 // pred_fallthru
          _
        // Predicated region
        $region29: #{tpu_custom_call.1} parent=11 // pred_check
          %p246 = pneg %p191
        $region30: #{tpu_custom_call.1} parent=11 // pred_check_branch
          %248 = sbr.rel (%p246) target = $region32
        $region31: #{tpu_custom_call.1} parent=11 // pred_region
          _
        $region32: #{tpu_custom_call.1} parent=11 // pred_fallthru
          _
      $region12: #{tpu_custom_call.1} parent=5 // pred_fallthru
        _
      %p249 = scmp.lt.s32.totalorder %s18, 2
      // Predicated region
      $region33: #{tpu_custom_call.1} parent=5 // pred_check
        %p250 = pneg %p249
      $region34: #{tpu_custom_call.1} parent=5 // pred_check_branch
        %252 = sbr.rel (%p250) target = $region36
      $region35: #{tpu_custom_call.1} parent=5 // pred_region
        // Predicated region
        $region37: #{tpu_custom_call.1} parent=35 // pred_check
          %p253 = pneg %p52
        $region38: #{tpu_custom_call.1} parent=35 // pred_check_branch
          %255 = sbr.rel (%p253) target = $region40
        $region39: #{tpu_custom_call.1} parent=35 // pred_region
          %s256 = sand.u32 %s42, 1
          %s257 = sand.u32 %s42, 1
          %s258 = smul.addr %s257, 8
          %s259 = scalar_lea.vmem [#allocation3], %s258
          %s260 = smul.u32 2, %s25
          %s261 = smul.addr %s260, 2
          %s262 = sadd.s32 %s26, %s261
          %s263 = smul.addr %s262, 4
          %s264 = scalar_lea.vmem %s0, %s263
          // Predicated region
          $region41: #{tpu_custom_call.1} parent=39 // pred_check
            _
          $region42: #{tpu_custom_call.1} parent=39 // pred_check_branch
            %266 = sbr.rel (0) target = $region44
          $region43: #{tpu_custom_call.1} parent=39 // pred_region
            // Predicated region
            $region45: #{tpu_custom_call.1} parent=43 // pred_check
              _
            $region46: #{tpu_custom_call.1} parent=43 // pred_check_branch
              %268 = sbr.rel target = $region48
            $region47: #{tpu_custom_call.1} parent=43 // pred_region
              // Predicated region
              $region60: #{tpu_custom_call.1} parent=47 // pred_check
                _
              $region61: #{tpu_custom_call.1} parent=47 // pred_check_branch
                %286 = sbr.rel (0) target = $region63
              $region62: #{tpu_custom_call.1} parent=47 // pred_region
                loop: start=0, step=1, limit=1
                $region64: #{tpu_custom_call.1} parent=62 // loop_pre_header
                  _
                $region65: #{tpu_custom_call.1} parent=62 // loop_header
                  %s288 = sphi 0, %s292
                  %p289 = scmp.ge.s32.totalorder %s288, 1
                  %s293 = sphi %s264, %s264
                  %s294 = sphi %s259, %s259
                $region66: #{tpu_custom_call.1} parent=62 // loop_header_branch
                  %291 = sbr.rel (%p289) target = $region70
                $region67: #{tpu_custom_call.1} parent=62 // loop_body
                  _
                $region68: #{tpu_custom_call.1} parent=62 // loop_footer
                  %s292 = sadd.s32 1, %s288
                $region69: #{tpu_custom_call.1} parent=62 // loop_footer_branch
                  %287 = sbr.rel target = $region65
                $region70: #{tpu_custom_call.1} parent=62 // loop_exit
                  _
                %s296 = ssub.s32 16, 1
                loop: start=0, step=1, limit=1
                $region71: #{tpu_custom_call.1} parent=62 // loop_pre_header
                  _
                $region72: #{tpu_custom_call.1} parent=62 // loop_header
                  %s298 = sphi 0, %s302
                  %p299 = scmp.ge.s32.totalorder %s298, 1
                  %s303 = sphi %s264, %s264
                  %s304 = sphi %s259, %s259
                $region73: #{tpu_custom_call.1} parent=62 // loop_header_branch
                  %301 = sbr.rel (%p299) target = $region77
                $region74: #{tpu_custom_call.1} parent=62 // loop_body
                  %v305 = vld [vmem:[%s303] sm:%s296]
                  %306 = vst [vmem:[%s304] sm:%s296] %v305
                  %v307 = vld [vmem:[%s303 + $0x8] sm:%s296]
                  %308 = vst [vmem:[%s304 + $0x4] sm:%s296] %v307
                $region75: #{tpu_custom_call.1} parent=62 // loop_footer
                  %s302 = sadd.s32 1, %s298
                $region76: #{tpu_custom_call.1} parent=62 // loop_footer_branch
                  %297 = sbr.rel target = $region72
                $region77: #{tpu_custom_call.1} parent=62 // loop_exit
                  _
              $region63: #{tpu_custom_call.1} parent=47 // pred_fallthru
                _
            $region48: #{tpu_custom_call.1} parent=43 // pred_fallthru
              _
            // Predicated region
            $region49: #{tpu_custom_call.1} parent=43 // pred_check
              _
            $region50: #{tpu_custom_call.1} parent=43 // pred_check_branch
              %270 = sbr.rel (0) target = $region52
            $region51: #{tpu_custom_call.1} parent=43 // pred_region
              %s272 = ssub.s32 16, 1
              loop: start=0, step=1, limit=1
              $region53: #{tpu_custom_call.1} parent=51 // loop_pre_header
                _
              $region54: #{tpu_custom_call.1} parent=51 // loop_header
                %s274 = sphi 0, %s278
                %p275 = scmp.ge.s32.totalorder %s274, 1
                %s279 = sphi %s264, %s264
                %s280 = sphi %s259, %s259
              $region55: #{tpu_custom_call.1} parent=51 // loop_header_branch
                %277 = sbr.rel (%p275) target = $region59
              $region56: #{tpu_custom_call.1} parent=51 // loop_body
                %v281 = vld [vmem:[%s279] sm:%s272]
                %282 = vst [vmem:[%s280] sm:%s272] %v281
                %v283 = vld [vmem:[%s279 + $0x8] sm:%s272]
                %284 = vst [vmem:[%s280 + $0x4] sm:%s272] %v283
              $region57: #{tpu_custom_call.1} parent=51 // loop_footer
                %s278 = sadd.s32 1, %s274
              $region58: #{tpu_custom_call.1} parent=51 // loop_footer_branch
                %273 = sbr.rel target = $region54
              $region59: #{tpu_custom_call.1} parent=51 // loop_exit
                _
            $region52: #{tpu_custom_call.1} parent=43 // pred_fallthru
              _
          $region44: #{tpu_custom_call.1} parent=39 // pred_fallthru
            _
          %309 = vnop
        $region40: #{tpu_custom_call.1} parent=35 // pred_fallthru
          _
        // Predicated region
        $region78: #{tpu_custom_call.1} parent=35 // pred_check
          %p310 = pneg %p80
        $region79: #{tpu_custom_call.1} parent=35 // pred_check_branch
          %312 = sbr.rel (%p310) target = $region81
        $region80: #{tpu_custom_call.1} parent=35 // pred_region
          %s313 = sand.u32 %s70, 1
          %s314 = sand.u32 %s70, 1
          %s315 = smul.addr %s314, 8
          %s316 = scalar_lea.vmem [#allocation4], %s315
          %s317 = smul.u32 2, %s25
          %s318 = smul.addr %s317, 2
          %s319 = sadd.s32 %s26, %s318
          %s320 = smul.addr %s319, 4
          %s321 = scalar_lea.vmem %s1, %s320
          // Predicated region
          $region82: #{tpu_custom_call.1} parent=80 // pred_check
            _
          $region83: #{tpu_custom_call.1} parent=80 // pred_check_branch
            %323 = sbr.rel (0) target = $region85
          $region84: #{tpu_custom_call.1} parent=80 // pred_region
            // Predicated region
            $region86: #{tpu_custom_call.1} parent=84 // pred_check
              _
            $region87: #{tpu_custom_call.1} parent=84 // pred_check_branch
              %325 = sbr.rel target = $region89
            $region88: #{tpu_custom_call.1} parent=84 // pred_region
              // Predicated region
              $region101: #{tpu_custom_call.1} parent=88 // pred_check
                _
              $region102: #{tpu_custom_call.1} parent=88 // pred_check_branch
                %343 = sbr.rel (0) target = $region104
              $region103: #{tpu_custom_call.1} parent=88 // pred_region
                loop: start=0, step=1, limit=1
                $region105: #{tpu_custom_call.1} parent=103 // loop_pre_header
                  _
                $region106: #{tpu_custom_call.1} parent=103 // loop_header
                  %s345 = sphi 0, %s349
                  %p346 = scmp.ge.s32.totalorder %s345, 1
                  %s350 = sphi %s321, %s321
                  %s351 = sphi %s316, %s316
                $region107: #{tpu_custom_call.1} parent=103 // loop_header_branch
                  %348 = sbr.rel (%p346) target = $region111
                $region108: #{tpu_custom_call.1} parent=103 // loop_body
                  _
                $region109: #{tpu_custom_call.1} parent=103 // loop_footer
                  %s349 = sadd.s32 1, %s345
                $region110: #{tpu_custom_call.1} parent=103 // loop_footer_branch
                  %344 = sbr.rel target = $region106
                $region111: #{tpu_custom_call.1} parent=103 // loop_exit
                  _
                %s353 = ssub.s32 16, 1
                loop: start=0, step=1, limit=1
                $region112: #{tpu_custom_call.1} parent=103 // loop_pre_header
                  _
                $region113: #{tpu_custom_call.1} parent=103 // loop_header
                  %s355 = sphi 0, %s359
                  %p356 = scmp.ge.s32.totalorder %s355, 1
                  %s360 = sphi %s321, %s321
                  %s361 = sphi %s316, %s316
                $region114: #{tpu_custom_call.1} parent=103 // loop_header_branch
                  %358 = sbr.rel (%p356) target = $region118
                $region115: #{tpu_custom_call.1} parent=103 // loop_body
                  %v362 = vld [vmem:[%s360] sm:%s353]
                  %363 = vst [vmem:[%s361] sm:%s353] %v362
                  %v364 = vld [vmem:[%s360 + $0x8] sm:%s353]
                  %365 = vst [vmem:[%s361 + $0x4] sm:%s353] %v364
                $region116: #{tpu_custom_call.1} parent=103 // loop_footer
                  %s359 = sadd.s32 1, %s355
                $region117: #{tpu_custom_call.1} parent=103 // loop_footer_branch
                  %354 = sbr.rel target = $region113
                $region118: #{tpu_custom_call.1} parent=103 // loop_exit
                  _
              $region104: #{tpu_custom_call.1} parent=88 // pred_fallthru
                _
            $region89: #{tpu_custom_call.1} parent=84 // pred_fallthru
              _
            // Predicated region
            $region90: #{tpu_custom_call.1} parent=84 // pred_check
              _
            $region91: #{tpu_custom_call.1} parent=84 // pred_check_branch
              %327 = sbr.rel (0) target = $region93
            $region92: #{tpu_custom_call.1} parent=84 // pred_region
              %s329 = ssub.s32 16, 1
              loop: start=0, step=1, limit=1
              $region94: #{tpu_custom_call.1} parent=92 // loop_pre_header
                _
              $region95: #{tpu_custom_call.1} parent=92 // loop_header
                %s331 = sphi 0, %s335
                %p332 = scmp.ge.s32.totalorder %s331, 1
                %s336 = sphi %s321, %s321
                %s337 = sphi %s316, %s316
              $region96: #{tpu_custom_call.1} parent=92 // loop_header_branch
                %334 = sbr.rel (%p332) target = $region100
              $region97: #{tpu_custom_call.1} parent=92 // loop_body
                %v338 = vld [vmem:[%s336] sm:%s329]
                %339 = vst [vmem:[%s337] sm:%s329] %v338
                %v340 = vld [vmem:[%s336 + $0x8] sm:%s329]
                %341 = vst [vmem:[%s337 + $0x4] sm:%s329] %v340
              $region98: #{tpu_custom_call.1} parent=92 // loop_footer
                %s335 = sadd.s32 1, %s331
              $region99: #{tpu_custom_call.1} parent=92 // loop_footer_branch
                %330 = sbr.rel target = $region95
              $region100: #{tpu_custom_call.1} parent=92 // loop_exit
                _
            $region93: #{tpu_custom_call.1} parent=84 // pred_fallthru
              _
          $region85: #{tpu_custom_call.1} parent=80 // pred_fallthru
            _
          %366 = vnop
        $region81: #{tpu_custom_call.1} parent=35 // pred_fallthru
          _
      $region36: #{tpu_custom_call.1} parent=5 // pred_fallthru
        _
      %p367 = scmp.le.s32.totalorder 1, %s18
      %p368 = scmp.lt.s32.totalorder %s18, 3
      %p369 = pnand %p367, %p368
      %p370 = pneg %p369
      // Predicated region
      $region119: #{tpu_custom_call.1} parent=5 // pred_check
        _
      $region120: #{tpu_custom_call.1} parent=5 // pred_check_branch
        %372 = sbr.rel (%p369) target = $region122
      $region121: #{tpu_custom_call.1} parent=5 // pred_region
        %s373 = ssub.s32 %s18, 1
        %s374 = sand.u32 %s45, 1
        %s375 = sand.u32 %s45, 1
        %s376 = smul.addr %s375, 8
        %s377 = scalar_lea.vmem [#allocation3], %s376
        // Predicated region
        $region123: #{tpu_custom_call.1} parent=121 // pred_check
          %p378 = pneg %p58
        $region124: #{tpu_custom_call.1} parent=121 // pred_check_branch
          %380 = sbr.rel (%p378) target = $region126
        $region125: #{tpu_custom_call.1} parent=121 // pred_region
          _
        $region126: #{tpu_custom_call.1} parent=121 // pred_fallthru
          _
        %s381 = sand.u32 %s73, 1
        %s382 = sand.u32 %s73, 1
        %s383 = smul.addr %s382, 8
        %s384 = scalar_lea.vmem [#allocation4], %s383
        // Predicated region
        $region127: #{tpu_custom_call.1} parent=121 // pred_check
          %p385 = pneg %p86
        $region128: #{tpu_custom_call.1} parent=121 // pred_check_branch
          %387 = sbr.rel (%p385) target = $region130
        $region129: #{tpu_custom_call.1} parent=121 // pred_region
          _
        $region130: #{tpu_custom_call.1} parent=121 // pred_fallthru
          _
        %s388 = sand.u32 %s45, 1
        %s389 = sand.u32 %s45, 1
        %s390 = smul.addr %s389, 8
        %s391 = scalar_lea.vmem [#allocation3], %s390
        %p392 = pneg %p58
        %p393 = pneg %p55
        %s394 = sand.u32 %s73, 1
        %s395 = sand.u32 %s73, 1
        %s396 = smul.addr %s395, 8
        %s397 = scalar_lea.vmem [#allocation4], %s396
        %p398 = pneg %p86
        %p399 = pneg %p83
        %p400 = pneg %p107
        %p401 = pneg %p104
        %p402 = pneg %p128
        %p403 = pneg %p125
        %p404 = pneg %p149
        %p405 = pneg %p146
        %p406 = pneg %p170
        %p407 = pneg %p167
        %p408 = pneg %p191
        %p409 = pneg %p188
        %p410 = pneg %p219
        %p411 = pneg %p216
        %s412 = sand.u32 %s206, 1
        %s413 = scalar_lea.sflag [#allocation6], %s412
        %s414 = sand.u32 %s206, 1
        %s415 = smul.addr %s414, 8
        %s416 = scalar_lea.vmem [#allocation5], %s415
        %s417 = smul.u32 2, %s27
        %s418 = smul.u32 2, %s27
        %s419 = smul.u32 2, %s27
        %v420 = vld [vmem:[%s2] sm:$0xff]
        %v421 = vld [vmem:[%s3] sm:$0xff]
        %v422 = vld [vmem:[%s4] sm:$0xff]
        %v423 = vld [vmem:[%s5] sm:$0xff]
        %v424 = vld [vmem:[#allocation2] sm:$0x1]
        %v425 = vld [vmem:[%s377] sm:$0xf]
        %v426 = vld [vmem:[%s384] sm:$0xf]
        %vm427 = vcmask 31744
        %v429 = vsel %vm427, %v421, 0
        %vm431 = vcmask 1043456
        %v433 = vsel %vm431, %v426, 0
        %435 = vmatprep.subr.mxu0 0.0
        %436 = vmatpush1.msra.mxu0 0.0
        %437 = vmatprep.subr.mxu0 0.0
        %438 = vmatpush1.msra.mxu0 0.0
        %439 = vmatprep.subr.mxu0 0.0
        %440 = vmatpush1.msra.mxu0 0.0
        %441 = vmatprep.subr.mxu0 0.0
        %442 = vmatpush1.msra.mxu0 0.0
        %443 = vmatprep.subr.mxu0 0.0
        %444 = vmatpush1.msra.mxu0 0.0
        %445 = vmatprep.subr.mxu0 0.0
        %446 = vmatpush1.msra.mxu0 0.0
        %447 = vmatprep.subr.mxu0 0.0
        %448 = vmatpush1.msra.mxu0 0.0
        %449 = vmatprep.subr.mxu0 0.0
        %450 = vmatpush1.msra.mxu0 0.0
        %451 = vmatprep.subr.mxu0 0.0
        %452 = vmatpush1.msra.mxu0 0.0
        %453 = vmatprep.subr.mxu0 0.0
        %454 = vmatpush1.msra.mxu0 0.0
        %455 = vmatprep.subr.mxu0 0.0
        %456 = vmatpush1.msra.mxu0 0.0
        %457 = vmatprep.subr.mxu0 0.0
        %458 = vmatpush1.msra.mxu0 0.0
        %459 = vmatprep.subr.mxu0 0.0
        %460 = vmatpush1.msra.mxu0 0.0
        %461 = vmatprep.subr.mxu0 0.0
        %462 = vmatpush1.msra.mxu0 0.0
        %463 = vmatprep.subr.mxu0 0.0
        %464 = vmatpush1.msra.mxu0 0.0
        %465 = vmatprep.subr.mxu0 0.0
        %466 = vmatpush1.msra.mxu0 %v433
        %467 = vmatprep.subr.mxu0 0.0
        %468 = vmatpush2.msra.mxu0 0.0
        %469 = vmatprep.subr.mxu0 0.0
        %470 = vmatpush2.msra.mxu0 0.0
        %471 = vmatprep.subr.mxu0 0.0
        %472 = vmatpush2.msra.mxu0 0.0
        %473 = vmatprep.subr.mxu0 0.0
        %474 = vmatpush2.msra.mxu0 0.0
        %475 = vmatprep.subr.mxu0 0.0
        %476 = vmatpush2.msra.mxu0 0.0
        %477 = vmatprep.subr.mxu0 0.0
        %478 = vmatpush2.msra.mxu0 0.0
        %479 = vmatprep.subr.mxu0 0.0
        %480 = vmatpush2.msra.mxu0 0.0
        %481 = vmatprep.subr.mxu0 0.0
        %482 = vmatpush2.msra.mxu0 0.0
        %483 = vmatprep.subr.mxu0 0.0
        %484 = vmatpush2.msra.mxu0 0.0
        %485 = vmatprep.subr.mxu0 0.0
        %486 = vmatpush2.msra.mxu0 0.0
        %487 = vmatprep.subr.mxu0 0.0
        %488 = vmatpush2.msra.mxu0 0.0
        %489 = vmatprep.subr.mxu0 0.0
        %490 = vmatpush2.msra.mxu0 0.0
        %491 = vmatprep.subr.mxu0 0.0
        %492 = vmatpush2.msra.mxu0 0.0
        %493 = vmatprep.subr.mxu0 0.0
        %494 = vmatpush2.msra.mxu0 0.0
        %495 = vmatprep.subr.mxu0 0.0
        %496 = vmatpush2.msra.mxu0 0.0
        %497 = vmatprep.subr.mxu0 0.0
        %498 = vmatpush2.msra.mxu0 0.0
        %499 = vmatprep.mubr.f32.mxu0 0.0
        %500 = vmatmul.mubr.f32.gmra.mxu0 %v429
        %v501 = vpop.f32.mrf.mxu0
        %v502 = vadd.f32 0.0, %v501
        %v503 = vpop.f32.mrf.mxu0
        %504 = vdwg.mxu0
        %v506 = vsel %vm427, %v420, 0
        %v509 = vsel %vm431, %v425, 0
        %511 = vmatprep.subr.mxu0 0.0
        %512 = vmatpush1.msra.mxu0 0.0
        %513 = vmatprep.subr.mxu0 0.0
        %514 = vmatpush1.msra.mxu0 0.0
        %515 = vmatprep.subr.mxu0 0.0
        %516 = vmatpush1.msra.mxu0 0.0
        %517 = vmatprep.subr.mxu0 0.0
        %518 = vmatpush1.msra.mxu0 0.0
        %519 = vmatprep.subr.mxu0 0.0
        %520 = vmatpush1.msra.mxu0 0.0
        %521 = vmatprep.subr.mxu0 0.0
        %522 = vmatpush1.msra.mxu0 0.0
        %523 = vmatprep.subr.mxu0 0.0
        %524 = vmatpush1.msra.mxu0 0.0
        %525 = vmatprep.subr.mxu0 0.0
        %526 = vmatpush1.msra.mxu0 0.0
        %527 = vmatprep.subr.mxu0 0.0
        %528 = vmatpush1.msra.mxu0 0.0
        %529 = vmatprep.subr.mxu0 0.0
        %530 = vmatpush1.msra.mxu0 0.0
        %531 = vmatprep.subr.mxu0 0.0
        %532 = vmatpush1.msra.mxu0 0.0
        %533 = vmatprep.subr.mxu0 0.0
        %534 = vmatpush1.msra.mxu0 0.0
        %535 = vmatprep.subr.mxu0 0.0
        %536 = vmatpush1.msra.mxu0 0.0
        %537 = vmatprep.subr.mxu0 0.0
        %538 = vmatpush1.msra.mxu0 0.0
        %539 = vmatprep.subr.mxu0 0.0
        %540 = vmatpush1.msra.mxu0 0.0
        %541 = vmatprep.subr.mxu0 0.0
        %542 = vmatpush1.msra.mxu0 %v509
        %543 = vmatprep.subr.mxu0 0.0
        %544 = vmatpush2.msra.mxu0 0.0
        %545 = vmatprep.subr.mxu0 0.0
        %546 = vmatpush2.msra.mxu0 0.0
        %547 = vmatprep.subr.mxu0 0.0
        %548 = vmatpush2.msra.mxu0 0.0
        %549 = vmatprep.subr.mxu0 0.0
        %550 = vmatpush2.msra.mxu0 0.0
        %551 = vmatprep.subr.mxu0 0.0
        %552 = vmatpush2.msra.mxu0 0.0
        %553 = vmatprep.subr.mxu0 0.0
        %554 = vmatpush2.msra.mxu0 0.0
        %555 = vmatprep.subr.mxu0 0.0
        %556 = vmatpush2.msra.mxu0 0.0
        %557 = vmatprep.subr.mxu0 0.0
        %558 = vmatpush2.msra.mxu0 0.0
        %559 = vmatprep.subr.mxu0 0.0
        %560 = vmatpush2.msra.mxu0 0.0
        %561 = vmatprep.subr.mxu0 0.0
        %562 = vmatpush2.msra.mxu0 0.0
        %563 = vmatprep.subr.mxu0 0.0
        %564 = vmatpush2.msra.mxu0 0.0
        %565 = vmatprep.subr.mxu0 0.0
        %566 = vmatpush2.msra.mxu0 0.0
        %567 = vmatprep.subr.mxu0 0.0
        %568 = vmatpush2.msra.mxu0 0.0
        %569 = vmatprep.subr.mxu0 0.0
        %570 = vmatpush2.msra.mxu0 0.0
        %571 = vmatprep.subr.mxu0 0.0
        %572 = vmatpush2.msra.mxu0 0.0
        %573 = vmatprep.subr.mxu0 0.0
        %574 = vmatpush2.msra.mxu0 0.0
        %575 = vmatprep.mubr.f32.mxu0 0.0
        %576 = vmatmul.mubr.f32.gmra.mxu0 %v506
        %v577 = vpop.f32.mrf.mxu0
        %v578 = vadd.f32 %v502, %v577
        %v579 = vpop.f32.mrf.mxu0
        %580 = vdwg.mxu0
        %582 = vset.pattern.permute.xlu0 0
        %583 = vperm.xlu0 %582, %v422
        %v584 = vpop.permute.xlu0 %583
        %v586 = vadd.f32 %v578, %v584
        %v587 = vmax.f32 %v586, 0.0
        %589 = vset.pattern.permute.xlu0 0
        %590 = vperm.xlu0 %589, %v423
        %v591 = vpop.permute.xlu0 %590
        %v593 = vmul.f32 %v587, %v591
        %v594 = vrot.slane %v593, 4
        %v595 = vadd.f32 %v593, %v594
        %v596 = vrot.slane %v595, 2
        %v597 = vadd.f32 %v595, %v596
        %v598 = vrot.slane %v597, 1
        %v599 = vadd.f32 %v597, %v598
        %601 = vset.pattern.permute.xlu0 0
        %602 = vperm.xlu0 %601, %v424
        %v603 = vpop.permute.xlu0 %602
        %v605 = vlaneseq
        %v606 = vshrl.u32 %v605, 7
        %v607 = vsub.s32 0, %v606
        %v608 = vrot.slane %v603, %v607
        %v609 = vadd.f32 %v599, %v608
        %v610 = vxor.u32 %v609, 2147483648
        %v611 = vmul.f32 %v610, 1.442695
        %v612 = vpow.pop %v611
        %v613 = vadd.f32 %v612, 1.0
        %v614 = vrcp.pop %v613
        %v615 = vmul.f32 1.0, %v614
        %v616 = vmul.f32 %v426, %v615
        %617 = vst [vmem:[%s416] sm:$0xf] %v616
        %s618 = scalar_lea.vmem %s377, 4 [#allocation3]
        %v619 = vld [vmem:[%s618] sm:$0xf]
        %s620 = scalar_lea.vmem %s384, 4 [#allocation4]
        %v621 = vld [vmem:[%s620] sm:$0xf]
        %v623 = vsel %vm431, %v621, 0
        %625 = vmatprep.subr.mxu0 0.0
        %626 = vmatpush1.msra.mxu0 0.0
        %627 = vmatprep.subr.mxu0 0.0
        %628 = vmatpush1.msra.mxu0 0.0
        %629 = vmatprep.subr.mxu0 0.0
        %630 = vmatpush1.msra.mxu0 0.0
        %631 = vmatprep.subr.mxu0 0.0
        %632 = vmatpush1.msra.mxu0 0.0
        %633 = vmatprep.subr.mxu0 0.0
        %634 = vmatpush1.msra.mxu0 0.0
        %635 = vmatprep.subr.mxu0 0.0
        %636 = vmatpush1.msra.mxu0 0.0
        %637 = vmatprep.subr.mxu0 0.0
        %638 = vmatpush1.msra.mxu0 0.0
        %639 = vmatprep.subr.mxu0 0.0
        %640 = vmatpush1.msra.mxu0 0.0
        %641 = vmatprep.subr.mxu0 0.0
        %642 = vmatpush1.msra.mxu0 0.0
        %643 = vmatprep.subr.mxu0 0.0
        %644 = vmatpush1.msra.mxu0 0.0
        %645 = vmatprep.subr.mxu0 0.0
        %646 = vmatpush1.msra.mxu0 0.0
        %647 = vmatprep.subr.mxu0 0.0
        %648 = vmatpush1.msra.mxu0 0.0
        %649 = vmatprep.subr.mxu0 0.0
        %650 = vmatpush1.msra.mxu0 0.0
        %651 = vmatprep.subr.mxu0 0.0
        %652 = vmatpush1.msra.mxu0 0.0
        %653 = vmatprep.subr.mxu0 0.0
        %654 = vmatpush1.msra.mxu0 0.0
        %655 = vmatprep.subr.mxu0 0.0
        %656 = vmatpush1.msra.mxu0 %v623
        %657 = vmatprep.subr.mxu0 0.0
        %658 = vmatpush2.msra.mxu0 0.0
        %659 = vmatprep.subr.mxu0 0.0
        %660 = vmatpush2.msra.mxu0 0.0
        %661 = vmatprep.subr.mxu0 0.0
        %662 = vmatpush2.msra.mxu0 0.0
        %663 = vmatprep.subr.mxu0 0.0
        %664 = vmatpush2.msra.mxu0 0.0
        %665 = vmatprep.subr.mxu0 0.0
        %666 = vmatpush2.msra.mxu0 0.0
        %667 = vmatprep.subr.mxu0 0.0
        %668 = vmatpush2.msra.mxu0 0.0
        %669 = vmatprep.subr.mxu0 0.0
        %670 = vmatpush2.msra.mxu0 0.0
        %671 = vmatprep.subr.mxu0 0.0
        %672 = vmatpush2.msra.mxu0 0.0
        %673 = vmatprep.subr.mxu0 0.0
        %674 = vmatpush2.msra.mxu0 0.0
        %675 = vmatprep.subr.mxu0 0.0
        %676 = vmatpush2.msra.mxu0 0.0
        %677 = vmatprep.subr.mxu0 0.0
        %678 = vmatpush2.msra.mxu0 0.0
        %679 = vmatprep.subr.mxu0 0.0
        %680 = vmatpush2.msra.mxu0 0.0
        %681 = vmatprep.subr.mxu0 0.0
        %682 = vmatpush2.msra.mxu0 0.0
        %683 = vmatprep.subr.mxu0 0.0
        %684 = vmatpush2.msra.mxu0 0.0
        %685 = vmatprep.subr.mxu0 0.0
        %686 = vmatpush2.msra.mxu0 0.0
        %687 = vmatprep.subr.mxu0 0.0
        %688 = vmatpush2.msra.mxu0 0.0
        %689 = vmatprep.mubr.f32.mxu0 0.0
        %690 = vmatmul.mubr.f32.gmra.mxu0 %v429
        %v691 = vpop.f32.mrf.mxu0
        %v692 = vadd.f32 0.0, %v691
        %v693 = vpop.f32.mrf.mxu0
        %694 = vdwg.mxu0
        %v696 = vsel %vm431, %v619, 0
        %698 = vmatprep.subr.mxu0 0.0
        %699 = vmatpush1.msra.mxu0 0.0
        %700 = vmatprep.subr.mxu0 0.0
        %701 = vmatpush1.msra.mxu0 0.0
        %702 = vmatprep.subr.mxu0 0.0
        %703 = vmatpush1.msra.mxu0 0.0
        %704 = vmatprep.subr.mxu0 0.0
        %705 = vmatpush1.msra.mxu0 0.0
        %706 = vmatprep.subr.mxu0 0.0
        %707 = vmatpush1.msra.mxu0 0.0
        %708 = vmatprep.subr.mxu0 0.0
        %709 = vmatpush1.msra.mxu0 0.0
        %710 = vmatprep.subr.mxu0 0.0
        %711 = vmatpush1.msra.mxu0 0.0
        %712 = vmatprep.subr.mxu0 0.0
        %713 = vmatpush1.msra.mxu0 0.0
        %714 = vmatprep.subr.mxu0 0.0
        %715 = vmatpush1.msra.mxu0 0.0
        %716 = vmatprep.subr.mxu0 0.0
        %717 = vmatpush1.msra.mxu0 0.0
        %718 = vmatprep.subr.mxu0 0.0
        %719 = vmatpush1.msra.mxu0 0.0
        %720 = vmatprep.subr.mxu0 0.0
        %721 = vmatpush1.msra.mxu0 0.0
        %722 = vmatprep.subr.mxu0 0.0
        %723 = vmatpush1.msra.mxu0 0.0
        %724 = vmatprep.subr.mxu0 0.0
        %725 = vmatpush1.msra.mxu0 0.0
        %726 = vmatprep.subr.mxu0 0.0
        %727 = vmatpush1.msra.mxu0 0.0
        %728 = vmatprep.subr.mxu0 0.0
        %729 = vmatpush1.msra.mxu0 %v696
        %730 = vmatprep.subr.mxu0 0.0
        %731 = vmatpush2.msra.mxu0 0.0
        %732 = vmatprep.subr.mxu0 0.0
        %733 = vmatpush2.msra.mxu0 0.0
        %734 = vmatprep.subr.mxu0 0.0
        %735 = vmatpush2.msra.mxu0 0.0
        %736 = vmatprep.subr.mxu0 0.0
        %737 = vmatpush2.msra.mxu0 0.0
        %738 = vmatprep.subr.mxu0 0.0
        %739 = vmatpush2.msra.mxu0 0.0
        %740 = vmatprep.subr.mxu0 0.0
        %741 = vmatpush2.msra.mxu0 0.0
        %742 = vmatprep.subr.mxu0 0.0
        %743 = vmatpush2.msra.mxu0 0.0
        %744 = vmatprep.subr.mxu0 0.0
        %745 = vmatpush2.msra.mxu0 0.0
        %746 = vmatprep.subr.mxu0 0.0
        %747 = vmatpush2.msra.mxu0 0.0
        %748 = vmatprep.subr.mxu0 0.0
        %749 = vmatpush2.msra.mxu0 0.0
        %750 = vmatprep.subr.mxu0 0.0
        %751 = vmatpush2.msra.mxu0 0.0
        %752 = vmatprep.subr.mxu0 0.0
        %753 = vmatpush2.msra.mxu0 0.0
        %754 = vmatprep.subr.mxu0 0.0
        %755 = vmatpush2.msra.mxu0 0.0
        %756 = vmatprep.subr.mxu0 0.0
        %757 = vmatpush2.msra.mxu0 0.0
        %758 = vmatprep.subr.mxu0 0.0
        %759 = vmatpush2.msra.mxu0 0.0
        %760 = vmatprep.subr.mxu0 0.0
        %761 = vmatpush2.msra.mxu0 0.0
        %762 = vmatprep.mubr.f32.mxu0 0.0
        %763 = vmatmul.mubr.f32.gmra.mxu0 %v506
        %v764 = vpop.f32.mrf.mxu0
        %v765 = vadd.f32 %v692, %v764
        %v766 = vpop.f32.mrf.mxu0
        %767 = vdwg.mxu0
        %v768 = vadd.f32 %v765, %v584
        %v769 = vmax.f32 %v768, 0.0
        %v770 = vmul.f32 %v769, %v591
        %v771 = vrot.slane %v770, 4
        %v772 = vadd.f32 %v770, %v771
        %v773 = vrot.slane %v772, 2
        %v774 = vadd.f32 %v772, %v773
        %v775 = vrot.slane %v774, 1
        %v776 = vadd.f32 %v774, %v775
        %v777 = vadd.f32 %v776, %v608
        %v778 = vxor.u32 %v777, 2147483648
        %v779 = vmul.f32 %v778, 1.442695
        %v780 = vpow.pop %v779
        %v781 = vadd.f32 %v780, 1.0
        %v782 = vrcp.pop %v781
        %v783 = vmul.f32 1.0, %v782
        %v784 = vmul.f32 %v621, %v783
        %s785 = scalar_lea.vmem %s416, 4 [#allocation5]
        %786 = vst [vmem:[%s785] sm:$0xf] %v784
        %s787 = sand.u32 %s206, 1
        %s788 = scalar_lea.sflag [#allocation6], %s787
        %s789 = sand.u32 %s206, 1
        %s790 = smul.addr %s789, 8
        %s791 = scalar_lea.vmem [#allocation5], %s790
        // Predicated region
        $region131: #{tpu_custom_call.1} parent=121 // pred_check
          %p792 = pneg %p216
        $region132: #{tpu_custom_call.1} parent=121 // pred_check_branch
          %794 = sbr.rel (%p792) target = $region134
        $region133: #{tpu_custom_call.1} parent=121 // pred_region
          %s795 = smul.u32 2, %s27
          %s797 = ssub.s32 128, 128
          %798 = vsyncadd %s788, %s797
          %s799 = smul.addr %s795, 2
          %s800 = sadd.s32 %s28, %s799
          %s801 = smul.addr %s800, 64
          %s802 = scalar_lea.hbm %s7, %s801
          %s803 = sshll.u32 %s791, 4
          %s804 = int_to_ptr.vmem [resolvable:$true] %s803
          %809 = dma.vmem_to_hbm [thread:$0]  %s804, 128, %s802, %s788, 64, 128, 4
        $region134: #{tpu_custom_call.1} parent=121 // pred_fallthru
          _
      $region122: #{tpu_custom_call.1} parent=5 // pred_fallthru
        _
      %p810 = scmp.le.s32.totalorder 2, %s18
      // Predicated region
      $region135: #{tpu_custom_call.1} parent=5 // pred_check
        %p811 = pneg %p810
      $region136: #{tpu_custom_call.1} parent=5 // pred_check_branch
        %813 = sbr.rel (%p811) target = $region138
      $region137: #{tpu_custom_call.1} parent=5 // pred_region
        %s814 = ssub.s32 %s18, 2
        // Predicated region
        $region139: #{tpu_custom_call.1} parent=137 // pred_check
          %p815 = pneg %p222
        $region140: #{tpu_custom_call.1} parent=137 // pred_check_branch
          %817 = sbr.rel (%p815) target = $region142
        $region141: #{tpu_custom_call.1} parent=137 // pred_region
          %s818 = sand.u32 %s207, 1
          %s819 = scalar_lea.sflag [#allocation6], %s818
          %s820 = sand.u32 %s207, 1
          %s821 = smul.addr %s820, 8
          %s822 = scalar_lea.vmem [#allocation5], %s821
          %823 = dma.done %s819, 128
        $region142: #{tpu_custom_call.1} parent=137 // pred_fallthru
          _
      $region138: #{tpu_custom_call.1} parent=5 // pred_fallthru
        _
    $region6: #{tpu_custom_call.1} parent=1 // loop_footer
      %s22 = sadd.s32 1, %s18
    $region7: #{tpu_custom_call.1} parent=1 // loop_footer_branch
      %17 = sbr.rel target = $region3
    $region8: #{tpu_custom_call.1} parent=1 // loop_exit
      _
    %824 = vsyncpa [#allocation6], 1
    %s825 = scalar_lea.sflag [#allocation6], 1
    %826 = vsyncpa %s825, 1

</llo_original>
